<compile_context>
chip_gen: v7x
topology: tpu7x:2x2x1
jax: 0.10.0
libtpu: 0.0.40
codegen_flags: <defaults>
</compile_context>

<pallas_src>
import numpy as np
import jax
import jax.numpy as jnp
from jax import lax
from jax.experimental import pallas as pl
from jax.experimental.pallas import tpu as pltpu

FUSE_EPS = 1e-4
BN_EPS = 1e-5
# TODO(synk): training-mode BatchNorm (batch statistics) is not implemented; the kernel
# uses inference-mode BN folded into the conv matrix (scale) plus a bias row.
# TODO(synk): the ceil_mode max-pool branch (use_ceil_mode -> True, i.e. pp less than 2x
# the size of p1 / odd spatial dims) is not implemented; the demo uses the standard
# BiFPN case pp == 2x p1 spatial, where ceil_mode is False.


def make_bottomup_fusion3(f_channels, H, W, params):
    """Build the fused BottomUpFusion3 forward.  p1/p2: (N,C,H,W), pp: (N,C,2H,2W)."""
    C = f_channels
    WC = W * C
    Hpad = H + 2

    # ---- host-side fast_normalize (static parameter -> compile-time scalars) ----
    w = np.maximum(np.asarray(params["fuse_weight"], np.float32), 0.0)
    w = w / (w.sum() + FUSE_EPS)
    w0, w1, w2 = float(w[0]), float(w[1]), float(w[2])

    # ---- fold depthwise 3x3 + pointwise 1x1 + BN scale into Mstack (exact) ----
    dw_w = np.asarray(params["dw_weight"], np.float32)         # (C, 3, 3)  [c, kh, kw]
    pw_w = np.asarray(params["pw_weight"], np.float32)         # (C_out, C_in)
    gamma = np.asarray(params["bn_gamma"], np.float32)
    beta = np.asarray(params["bn_beta"], np.float32)
    mean = np.asarray(params["bn_mean"], np.float32)
    var = np.asarray(params["bn_var"], np.float32)
    scale = gamma / np.sqrt(var + BN_EPS)                      # (C,)
    bias = beta - mean * scale                                 # (C,)

    # pw_scaled_T[c, o] = pw[o, c] * scale[o]
    pw_scaled_T = (pw_w * scale[:, None]).T                    # (C_in, C_out)

    # M[kh][wp*C+c, w*C+o] = sum_kw 1{wp == w+kw-1 in range} dw[c,kh,kw]*pw[o,c]*scale[o]
    M = np.zeros((3, WC, WC), np.float32)
    for kh in range(3):
        for kw in range(3):
            blk = dw_w[:, kh, kw][:, None] * pw_scaled_T       # (C, C) over (c, o)
            for wcol in range(W):
                wp = wcol + kw - 1
                if 0 <= wp < W:
                    M[kh, wp * C:(wp + 1) * C, wcol * C:(wcol + 1) * C] += blk
    Mstack = jnp.asarray(np.concatenate([M[0], M[1], M[2]], axis=1),
                         dtype=jnp.bfloat16)                   # (WC, 3*WC)
    bias_row = jnp.asarray(np.tile(bias, W)[None, :], dtype=jnp.float32)  # (1, WC)

    # ---- kernel: whole batch in one grid step, one MXU matmul ----
    def kernel(p1_ref, p2_ref, pp_ref, m_ref, b_ref, o_ref):
        f32 = jnp.float32
        bf16 = jnp.bfloat16
        N = p1_ref.shape[0]
        m = m_ref[...]                                  # (WC, 3WC) bf16 (hoisted)
        b = b_ref[...]                                  # (1, WC) f32

        p1 = p1_ref[...]                                # (N, H, WC) f32
        p2 = p2_ref[...]
        q = pp_ref[...]                                 # (N, H, 4*WC) f32
        # 2x2 max-pool: 4 lane-aligned WC-wide slabs -> elementwise max (VPU)
        pooled = jnp.maximum(
            jnp.maximum(q[..., 0:WC], q[..., WC:2 * WC]),
            jnp.maximum(q[..., 2 * WC:3 * WC], q[..., 3 * WC:4 * WC]))
        # weighted fusion (f32 VPU, weights are compile-time scalars)
        x = (w0 * p1 + w1 * p2 + w2 * pooled).astype(bf16)     # (N, H, WC) bf16

        # Stack all images, each zero-padded top/bottom, into one MXU operand.
        zrow = jnp.zeros((1, WC), bf16)
        rows = []
        for n in range(N):                              # N is small & static
            rows += [zrow, x[n], zrow]
        x_pad = jnp.concatenate(rows, axis=0)           # (N*(H+2), WC)

        # depthwise3x3 + pointwise1x1 + BN-scale: ONE wide bf16 MXU matmul
        t = jnp.dot(x_pad, m, preferred_element_type=f32)      # (N*(H+2), 3WC)

        # 3 row (kh) shifts realized as static sublane slices of t, per image
        for n in range(N):
            base = n * Hpad
            y = (t[base + 0:base + H, 0:WC]
                 + t[base + 1:base + H + 1, WC:2 * WC]
                 + t[base + 2:base + H + 2, 2 * WC:3 * WC])
            o_ref[n] = jnp.maximum(y + b, 0.0)          # BN bias + ReLU

    def forward(p1_nchw, p2_nchw, pp_nchw):
        N = p1_nchw.shape[0]
        # NCHW -> fused (N, H, W*C) slabs (in a real BiFPN keep this layout across nodes)
        p1f = jnp.transpose(p1_nchw, (0, 2, 3, 1)).reshape(N, H, WC).astype(jnp.float32)
        p2f = jnp.transpose(p2_nchw, (0, 2, 3, 1)).reshape(N, H, WC).astype(jnp.float32)
        # pp: arrange the 4 taps of each 2x2 pooling window as 4 contiguous WC slabs:
        # lane index = ((hr*2+wr)*W + w)*C + c  with  pp[n, c, 2h+hr, 2w+wr]
        ppf = (pp_nchw.astype(jnp.float32)
               .reshape(N, C, H, 2, W, 2)
               .transpose(0, 2, 3, 5, 4, 1)
               .reshape(N, H, 4 * WC))

        out_flat = pl.pallas_call(
            kernel,
            out_shape=jax.ShapeDtypeStruct((N, H, WC), jnp.float32),
            grid=(1,),
            in_specs=[
                pl.BlockSpec((N, H, WC), lambda i: (0, 0, 0)),        # p1
                pl.BlockSpec((N, H, WC), lambda i: (0, 0, 0)),        # p2
                pl.BlockSpec((N, H, 4 * WC), lambda i: (0, 0, 0)),    # pp (pool taps)
                pl.BlockSpec((WC, 3 * WC), lambda i: (0, 0)),         # folded conv matrix
                pl.BlockSpec((1, WC), lambda i: (0, 0)),              # BN bias row
            ],
            out_specs=pl.BlockSpec((N, H, WC), lambda i: (0, 0, 0)),
            compiler_params=pltpu.CompilerParams(
                dimension_semantics=("arbitrary",)),
        )(p1f, p2f, ppf, Mstack, bias_row)

        # back to NCHW (module I/O contract)
        return out_flat.reshape(N, H, W, C).transpose(0, 3, 1, 2)

    return forward


def _reference(p1, p2, pp, params):
    """Pure-JAX NCHW reference (f32, HIGHEST precision) for validation."""
    C = p1.shape[1]
    hi = lax.Precision.HIGHEST
    pooled = lax.reduce_window(pp, -jnp.inf, lax.max,
                               (1, 1, 2, 2), (1, 1, 2, 2), 'VALID')
    wt = jnp.maximum(jnp.asarray(params["fuse_weight"]), 0.0)
    wt = wt / (jnp.sum(wt) + FUSE_EPS)
    x = wt[0] * p1 + wt[1] * p2 + wt[2] * pooled
    dw = jnp.asarray(params["dw_weight"])[:, None, :, :]            # (C,1,3,3)
    y = lax.conv_general_dilated(x, dw, (1, 1), 'SAME',
                                 dimension_numbers=('NCHW', 'OIHW', 'NCHW'),
                                 feature_group_count=C, precision=hi)
    pw = jnp.asarray(params["pw_weight"])[:, :, None, None]         # (C,C,1,1)
    y = lax.conv_general_dilated(y, pw, (1, 1), 'SAME',
                                 dimension_numbers=('NCHW', 'OIHW', 'NCHW'),
                                 precision=hi)
    scale = params["bn_gamma"] / jnp.sqrt(params["bn_var"] + BN_EPS)
    bias = params["bn_beta"] - params["bn_mean"] * scale
    y = y * scale[None, :, None, None] + bias[None, :, None, None]
    return jnp.maximum(y, 0.0)


if __name__ == "__main__":
    N, C, H, W = 2, 8, 16, 16        # p1, p2: feature maps at the target resolution
    Hp, Wp = 2 * H, 2 * W            # pp: finer map from the bottom-up path (2x) -> ceil_mode False

    key = jax.random.PRNGKey(0)
    ks = jax.random.split(key, 9)
    p1 = jax.random.normal(ks[0], (N, C, H, W), jnp.float32)
    p2 = jax.random.normal(ks[1], (N, C, H, W), jnp.float32)
    pp = jax.random.normal(ks[2], (N, C, Hp, Wp), jnp.float32)

    params = {
        "fuse_weight": jnp.abs(jax.random.normal(ks[3], (3,), jnp.float32)) + 0.5,
        "dw_weight": 0.2 * jax.random.normal(ks[4], (C, 3, 3), jnp.float32),   # torch (C,1,3,3)
        "pw_weight": 0.2 * jax.random.normal(ks[5], (C, C), jnp.float32),      # torch (C,C,1,1)
        "bn_gamma": 1.0 + 0.1 * jax.random.normal(ks[6], (C,), jnp.float32),
        "bn_beta": 0.1 * jax.random.normal(ks[7], (C,), jnp.float32),
        "bn_mean": 0.1 * jax.random.normal(ks[8], (C,), jnp.float32),
        "bn_var": jnp.ones((C,), jnp.float32),
    }

    fwd = jax.jit(make_bottomup_fusion3(C, H, W, params))
    out = jax.block_until_ready(fwd(p1, p2, pp))
    assert out.shape == (N, C, H, W)

    ref = jax.block_until_ready(_reference(p1, p2, pp, params))
    # Kernel runs the conv matmul with bf16 operands (f32 accumulate); 1e-2 tolerance
    # vs the f32/HIGHEST reference bounds that rounding.
    np.testing.assert_allclose(np.asarray(out), np.asarray(ref),
                               rtol=1e-2, atol=1e-2)
    print("KERNEL_OK")
</pallas_src>

<mosaic_0001>
module attributes {stable_mosaic.version = 11 : i64} {
  func.func @kernel(%arg0: i32, %arg1: memref<2x16x128xf32, #tpu.memory_space<vmem>>, %arg2: memref<2x16x128xf32, #tpu.memory_space<vmem>>, %arg3: memref<2x16x512xf32, #tpu.memory_space<vmem>>, %arg4: memref<128x384xbf16, #tpu.memory_space<vmem>>, %arg5: memref<1x128xf32, #tpu.memory_space<vmem>>, %arg6: memref<2x16x128xf32, #tpu.memory_space<vmem>>) attributes {dimension_semantics = [#tpu.dimension_semantics<arbitrary>], iteration_bounds = array<i64: 1>, scalar_prefetch = 0 : i64, scratch_operands = 0 : i64, tpu.core_type = #tpu.core_type<tc>, window_params = [{pipeline_mode = #tpu.pipeline_mode<synchronous>, transform_indices = @transform_0, window_bounds = array<i64: 2, 16, 128>}, {pipeline_mode = #tpu.pipeline_mode<synchronous>, transform_indices = @transform_1, window_bounds = array<i64: 2, 16, 128>}, {pipeline_mode = #tpu.pipeline_mode<synchronous>, transform_indices = @transform_2, window_bounds = array<i64: 2, 16, 512>}, {pipeline_mode = #tpu.pipeline_mode<synchronous>, transform_indices = @transform_3, window_bounds = array<i64: 128, 384>}, {pipeline_mode = #tpu.pipeline_mode<synchronous>, transform_indices = @transform_4, window_bounds = array<i64: 1, 128>}, {pipeline_mode = #tpu.pipeline_mode<synchronous>, transform_indices = @transform_5, window_bounds = array<i64: 2, 16, 128>}]} {
    %c0 = arith.constant 0 : index
    %c0_0 = arith.constant 0 : index
    %0 = vector.load %arg4[%c0, %c0_0] : memref<128x384xbf16, #tpu.memory_space<vmem>>, vector<128x384xbf16>
    %c0_1 = arith.constant 0 : index
    %c0_2 = arith.constant 0 : index
    %1 = vector.load %arg5[%c0_1, %c0_2] : memref<1x128xf32, #tpu.memory_space<vmem>>, vector<1x128xf32>
    %c0_3 = arith.constant 0 : index
    %c0_4 = arith.constant 0 : index
    %c0_5 = arith.constant 0 : index
    %2 = vector.load %arg1[%c0_3, %c0_4, %c0_5] : memref<2x16x128xf32, #tpu.memory_space<vmem>>, vector<2x16x128xf32>
    %c0_6 = arith.constant 0 : index
    %c0_7 = arith.constant 0 : index
    %c0_8 = arith.constant 0 : index
    %3 = vector.load %arg2[%c0_6, %c0_7, %c0_8] : memref<2x16x128xf32, #tpu.memory_space<vmem>>, vector<2x16x128xf32>
    %c0_9 = arith.constant 0 : index
    %c0_10 = arith.constant 0 : index
    %c0_11 = arith.constant 0 : index
    %4 = vector.load %arg3[%c0_9, %c0_10, %c0_11] : memref<2x16x512xf32, #tpu.memory_space<vmem>>, vector<2x16x512xf32>
    %5 = vector.extract_strided_slice %4 {offsets = [0, 0, 0], sizes = [2, 16, 128], strides = [1, 1, 1]} : vector<2x16x512xf32> to vector<2x16x128xf32>
    %6 = vector.extract_strided_slice %4 {offsets = [0, 0, 128], sizes = [2, 16, 128], strides = [1, 1, 1]} : vector<2x16x512xf32> to vector<2x16x128xf32>
    %7 = arith.maximumf %5, %6 : vector<2x16x128xf32>
    %8 = vector.extract_strided_slice %4 {offsets = [0, 0, 256], sizes = [2, 16, 128], strides = [1, 1, 1]} : vector<2x16x512xf32> to vector<2x16x128xf32>
    %9 = vector.extract_strided_slice %4 {offsets = [0, 0, 384], sizes = [2, 16, 128], strides = [1, 1, 1]} : vector<2x16x512xf32> to vector<2x16x128xf32>
    %10 = arith.maximumf %8, %9 : vector<2x16x128xf32>
    %11 = arith.maximumf %7, %10 : vector<2x16x128xf32>
    %cst = arith.constant 0.253321886 : f32
    %12 = vector.broadcast %cst : f32 to vector<2x16x128xf32>
    %13 = arith.mulf %12, %2 : vector<2x16x128xf32>
    %cst_12 = arith.constant 0.253967732 : f32
    %14 = vector.broadcast %cst_12 : f32 to vector<2x16x128xf32>
    %15 = arith.mulf %14, %3 : vector<2x16x128xf32>
    %16 = arith.addf %13, %15 : vector<2x16x128xf32>
    %cst_13 = arith.constant 0.492687821 : f32
    %17 = vector.broadcast %cst_13 : f32 to vector<2x16x128xf32>
    %18 = arith.mulf %17, %11 : vector<2x16x128xf32>
    %19 = arith.addf %16, %18 : vector<2x16x128xf32>
    %20 = arith.truncf %19 : vector<2x16x128xf32> to vector<2x16x128xbf16>
    %cst_14 = arith.constant 0.000000e+00 : bf16
    %21 = vector.broadcast %cst_14 : bf16 to vector<1x128xbf16>
    %22 = vector.extract_strided_slice %20 {offsets = [0, 0, 0], sizes = [1, 16, 128], strides = [1, 1, 1]} : vector<2x16x128xbf16> to vector<1x16x128xbf16>
    %23 = vector.shape_cast %22 : vector<1x16x128xbf16> to vector<16x128xbf16>
    %24 = vector.extract_strided_slice %20 {offsets = [1, 0, 0], sizes = [1, 16, 128], strides = [1, 1, 1]} : vector<2x16x128xbf16> to vector<1x16x128xbf16>
    %25 = vector.shape_cast %24 : vector<1x16x128xbf16> to vector<16x128xbf16>
    %26 = tpu.concatenate %21, %23, %21, %21, %25, %21 in 0 : vector<1x128xbf16>, vector<16x128xbf16>, vector<1x128xbf16>, vector<1x128xbf16>, vector<16x128xbf16>, vector<1x128xbf16> -> vector<36x128xbf16>
    %cst_15 = arith.constant dense<0.000000e+00> : vector<36x384xf32>
    %27 = tpu.matmul %26, %0, %cst_15 {dimension_numbers = #tpu.dot_dimension_numbers<[1], [0], [0], [1], [0, 0, 1, 1], [], []>} : vector<36x128xbf16>, vector<128x384xbf16>, vector<36x384xf32> -> vector<36x384xf32>
    %28 = vector.extract_strided_slice %27 {offsets = [0, 0], sizes = [16, 128], strides = [1, 1]} : vector<36x384xf32> to vector<16x128xf32>
    %29 = vector.extract_strided_slice %27 {offsets = [1, 128], sizes = [16, 128], strides = [1, 1]} : vector<36x384xf32> to vector<16x128xf32>
    %30 = arith.addf %28, %29 : vector<16x128xf32>
    %31 = vector.extract_strided_slice %27 {offsets = [2, 256], sizes = [16, 128], strides = [1, 1]} : vector<36x384xf32> to vector<16x128xf32>
    %32 = arith.addf %30, %31 : vector<16x128xf32>
    %33 = vector.broadcast %1 : vector<1x128xf32> to vector<16x128xf32>
    %34 = arith.addf %32, %33 : vector<16x128xf32>
    %cst_16 = arith.constant 0.000000e+00 : f32
    %35 = vector.broadcast %cst_16 : f32 to vector<16x128xf32>
    %36 = arith.maximumf %34, %35 : vector<16x128xf32>
    %c0_17 = arith.constant 0 : index
    %c0_18 = arith.constant 0 : index
    %c0_19 = arith.constant 0 : index
    %37 = vector.load %arg6[%c0_17, %c0_18, %c0_19] : memref<2x16x128xf32, #tpu.memory_space<vmem>>, vector<1x16x128xf32>
    %38 = vector.shape_cast %37 : vector<1x16x128xf32> to vector<16x128xf32>
    %39 = vector.shape_cast %36 : vector<16x128xf32> to vector<1x16x128xf32>
    tpu.vector_store %arg6[%c0_17, %c0_18, %c0_19], %39 {strides = array<i32>} : memref<2x16x128xf32, #tpu.memory_space<vmem>>, vector<1x16x128xf32>,
    %40 = vector.extract_strided_slice %27 {offsets = [18, 0], sizes = [16, 128], strides = [1, 1]} : vector<36x384xf32> to vector<16x128xf32>
    %41 = vector.extract_strided_slice %27 {offsets = [19, 128], sizes = [16, 128], strides = [1, 1]} : vector<36x384xf32> to vector<16x128xf32>
    %42 = arith.addf %40, %41 : vector<16x128xf32>
    %43 = vector.extract_strided_slice %27 {offsets = [20, 256], sizes = [16, 128], strides = [1, 1]} : vector<36x384xf32> to vector<16x128xf32>
    %44 = arith.addf %42, %43 : vector<16x128xf32>
    %45 = vector.broadcast %1 : vector<1x128xf32> to vector<16x128xf32>
    %46 = arith.addf %44, %45 : vector<16x128xf32>
    %cst_20 = arith.constant 0.000000e+00 : f32
    %47 = vector.broadcast %cst_20 : f32 to vector<16x128xf32>
    %48 = arith.maximumf %46, %47 : vector<16x128xf32>
    %c1 = arith.constant 1 : index
    %c0_21 = arith.constant 0 : index
    %c0_22 = arith.constant 0 : index
    %49 = vector.load %arg6[%c1, %c0_21, %c0_22] : memref<2x16x128xf32, #tpu.memory_space<vmem>>, vector<1x16x128xf32>
    %50 = vector.shape_cast %49 : vector<1x16x128xf32> to vector<16x128xf32>
    %51 = vector.shape_cast %48 : vector<16x128xf32> to vector<1x16x128xf32>
    tpu.vector_store %arg6[%c1, %c0_21, %c0_22], %51 {strides = array<i32>} : memref<2x16x128xf32, #tpu.memory_space<vmem>>, vector<1x16x128xf32>,
    return
  }
  func.func @transform_0(%arg0: i32) -> (i32, i32, i32) {
    %c0_i32 = arith.constant 0 : i32
    %c0_i32_0 = arith.constant 0 : i32
    %c0_i32_1 = arith.constant 0 : i32
    %c0_i32_2 = arith.constant 0 : i32
    return %c0_i32, %c0_i32_0, %c0_i32_1 : i32, i32, i32
  }
  func.func @transform_1(%arg0: i32) -> (i32, i32, i32) {
    %c0_i32 = arith.constant 0 : i32
    %c0_i32_0 = arith.constant 0 : i32
    %c0_i32_1 = arith.constant 0 : i32
    %c0_i32_2 = arith.constant 0 : i32
    return %c0_i32, %c0_i32_0, %c0_i32_1 : i32, i32, i32
  }
  func.func @transform_2(%arg0: i32) -> (i32, i32, i32) {
    %c0_i32 = arith.constant 0 : i32
    %c0_i32_0 = arith.constant 0 : i32
    %c0_i32_1 = arith.constant 0 : i32
    %c0_i32_2 = arith.constant 0 : i32
    return %c0_i32, %c0_i32_0, %c0_i32_1 : i32, i32, i32
  }
  func.func @transform_3(%arg0: i32) -> (i32, i32) {
    %c0_i32 = arith.constant 0 : i32
    %c0_i32_0 = arith.constant 0 : i32
    %c0_i32_1 = arith.constant 0 : i32
    return %c0_i32, %c0_i32_0 : i32, i32
  }
  func.func @transform_4(%arg0: i32) -> (i32, i32) {
    %c0_i32 = arith.constant 0 : i32
    %c0_i32_0 = arith.constant 0 : i32
    %c0_i32_1 = arith.constant 0 : i32
    return %c0_i32, %c0_i32_0 : i32, i32
  }
  func.func @transform_5(%arg0: i32) -> (i32, i32, i32) {
    %c0_i32 = arith.constant 0 : i32
    %c0_i32_0 = arith.constant 0 : i32
    %c0_i32_1 = arith.constant 0 : i32
    %c0_i32_2 = arith.constant 0 : i32
    return %c0_i32, %c0_i32_0, %c0_i32_1 : i32, i32, i32
  }
}

</mosaic_0001>

<llo_original>
// kernel: forward.1
$region0: #{forward.1}
  #allocation0 [shape = 'u32[]', space=smem, size = 0x4, offset = 0x4, fixed_abs, tag = 'smem constant byte address 0x4 - core index']
  #allocation1 [shape = 'u32[144,128]{1,0:T(1,128)}', space=vmem, size = 0x12000, scoped, tag = 'internal scratch']
  %s0 = inlined_call_operand.vmem [shape: f32[2,16,128], index: 0, kind: input, shape index: {}]
  %s1 = inlined_call_operand.vmem [shape: f32[2,16,128], index: 1, kind: input, shape index: {}]
  %s2 = inlined_call_operand.vmem [shape: f32[2,16,512], index: 2, kind: input, shape index: {}]
  %s3 = inlined_call_operand.vmem [shape: bf16[128,384], index: 3, kind: input, shape index: {}]
  %s4 = inlined_call_operand.vmem [shape: f32[1,128], index: 4, kind: input, shape index: {}]
  %s5 = inlined_call_operand.vmem [shape: f32[2,16,128], index: 5, kind: output, shape index: {}]
  %s6 = sld [smem:[#allocation0]]
  $region30: #{forward.1} parent=0
    _
  %s8 = ssub.s32 1, %s6
  %s9 = scalar_select 0, %s8, %s6
  // Predicated region
  $region2: #{forward.1} parent=0 // pred_check
    _
  $region3: #{forward.1} parent=0 // pred_check_branch
    %11 = sbr.rel (0) target = $region5
  $region4: #{forward.1} parent=0 // pred_region
    _
  $region5: #{forward.1} parent=0 // pred_fallthru
    _
  // Predicated region
  $region6: #{forward.1} parent=0 // pred_check
    _
  $region7: #{forward.1} parent=0 // pred_check_branch
    %13 = sbr.rel (0) target = $region9
  $region8: #{forward.1} parent=0 // pred_region
    _
  $region9: #{forward.1} parent=0 // pred_fallthru
    _
  // Predicated region
  $region10: #{forward.1} parent=0 // pred_check
    _
  $region11: #{forward.1} parent=0 // pred_check_branch
    %15 = sbr.rel (0) target = $region13
  $region12: #{forward.1} parent=0 // pred_region
    _
  $region13: #{forward.1} parent=0 // pred_fallthru
    _
  // Predicated region
  $region14: #{forward.1} parent=0 // pred_check
    _
  $region15: #{forward.1} parent=0 // pred_check_branch
    %17 = sbr.rel (0) target = $region17
  $region16: #{forward.1} parent=0 // pred_region
    _
  $region17: #{forward.1} parent=0 // pred_fallthru
    _
  // Predicated region
  $region18: #{forward.1} parent=0 // pred_check
    _
  $region19: #{forward.1} parent=0 // pred_check_branch
    %19 = sbr.rel (0) target = $region21
  $region20: #{forward.1} parent=0 // pred_region
    _
  $region21: #{forward.1} parent=0 // pred_fallthru
    _
  %v21 = vld [vmem:[%s3] sm:$0xff]
  %v22 = vld [vmem:[%s3 + $0x8] sm:$0xf]
  %v23 = vld [vmem:[%s3 + $0xc] sm:$0xff]
  %v24 = vld [vmem:[%s3 + $0x14] sm:$0xf]
  %v25 = vld [vmem:[%s3 + $0x18] sm:$0xff]
  %v26 = vld [vmem:[%s3 + $0x20] sm:$0xf]
  %v27 = vld [vmem:[%s3 + $0x24] sm:$0xff]
  %v28 = vld [vmem:[%s3 + $0x2c] sm:$0xf]
  %v29 = vld [vmem:[%s3 + $0x30] sm:$0xff]
  %v30 = vld [vmem:[%s3 + $0x38] sm:$0xf]
  %v31 = vld [vmem:[%s3 + $0x3c] sm:$0xff]
  %v32 = vld [vmem:[%s3 + $0x44] sm:$0xf]
  %v33 = vld [vmem:[%s3 + $0x48] sm:$0xff]
  %v34 = vld [vmem:[%s3 + $0x50] sm:$0xf]
  %v35 = vld [vmem:[%s3 + $0x54] sm:$0xff]
  %v36 = vld [vmem:[%s3 + $0x5c] sm:$0xf]
  %v37 = vld [vmem:[%s3 + $0x60] sm:$0xff]
  %v38 = vld [vmem:[%s3 + $0x68] sm:$0xf]
  %v39 = vld [vmem:[%s3 + $0x6c] sm:$0xff]
  %v40 = vld [vmem:[%s3 + $0x74] sm:$0xf]
  %v41 = vld [vmem:[%s3 + $0x78] sm:$0xff]
  %v42 = vld [vmem:[%s3 + $0x80] sm:$0xf]
  %v43 = vld [vmem:[%s3 + $0x84] sm:$0xff]
  %v44 = vld [vmem:[%s3 + $0x8c] sm:$0xf]
  %v45 = vld [vmem:[%s3 + $0x90] sm:$0xff]
  %v46 = vld [vmem:[%s3 + $0x98] sm:$0xf]
  %v47 = vld [vmem:[%s3 + $0x9c] sm:$0xff]
  %v48 = vld [vmem:[%s3 + $0xa4] sm:$0xf]
  %v49 = vld [vmem:[%s3 + $0xa8] sm:$0xff]
  %v50 = vld [vmem:[%s3 + $0xb0] sm:$0xf]
  %v51 = vld [vmem:[%s3 + $0xb4] sm:$0xff]
  %v52 = vld [vmem:[%s3 + $0xbc] sm:$0xf]
  %v53 = vld [vmem:[%s4] sm:$0x1]
  %v54 = vld [vmem:[%s0] sm:$0xff]
  %v55 = vld [vmem:[%s0 + $0x8] sm:$0xff]
  %v56 = vld [vmem:[%s0 + $0x10] sm:$0xff]
  %v57 = vld [vmem:[%s0 + $0x18] sm:$0xff]
  %v58 = vld [vmem:[%s1] sm:$0xff]
  %v59 = vld [vmem:[%s1 + $0x8] sm:$0xff]
  %v60 = vld [vmem:[%s1 + $0x10] sm:$0xff]
  %v61 = vld [vmem:[%s1 + $0x18] sm:$0xff]
  %v62 = vld [vmem:[%s2] sm:$0xff]
  %v63 = vld [vmem:[%s2 + $0x8] sm:$0xff]
  %v64 = vld [vmem:[%s2 + $0x10] sm:$0xff]
  %v65 = vld [vmem:[%s2 + $0x18] sm:$0xff]
  %v66 = vld [vmem:[%s2 + $0x20] sm:$0xff]
  %v67 = vld [vmem:[%s2 + $0x28] sm:$0xff]
  %v68 = vld [vmem:[%s2 + $0x30] sm:$0xff]
  %v69 = vld [vmem:[%s2 + $0x38] sm:$0xff]
  %v70 = vld [vmem:[%s2 + $0x40] sm:$0xff]
  %v71 = vld [vmem:[%s2 + $0x48] sm:$0xff]
  %v72 = vld [vmem:[%s2 + $0x50] sm:$0xff]
  %v73 = vld [vmem:[%s2 + $0x58] sm:$0xff]
  %v74 = vld [vmem:[%s2 + $0x60] sm:$0xff]
  %v75 = vld [vmem:[%s2 + $0x68] sm:$0xff]
  %v76 = vld [vmem:[%s2 + $0x70] sm:$0xff]
  %v77 = vld [vmem:[%s2 + $0x78] sm:$0xff]
  %v78 = vmax.f32 %v62, %v63
  %v79 = vmax.f32 %v66, %v67
  %v80 = vmax.f32 %v70, %v71
  %v81 = vmax.f32 %v74, %v75
  %v82 = vmax.f32 %v64, %v65
  %v83 = vmax.f32 %v68, %v69
  %v84 = vmax.f32 %v72, %v73
  %v85 = vmax.f32 %v76, %v77
  %v86 = vmax.f32 %v78, %v82
  %v87 = vmax.f32 %v79, %v83
  %v88 = vmax.f32 %v80, %v84
  %v89 = vmax.f32 %v81, %v85
  %v90 = vmul.f32 %v54, 0.2533219
  %v91 = vmul.f32 %v55, 0.2533219
  %v92 = vmul.f32 %v56, 0.2533219
  %v93 = vmul.f32 %v57, 0.2533219
  %v94 = vmul.f32 %v58, 0.25396773
  %v95 = vmul.f32 %v59, 0.25396773
  %v96 = vmul.f32 %v60, 0.25396773
  %v97 = vmul.f32 %v61, 0.25396773
  %v98 = vadd.f32 %v90, %v94
  %v99 = vadd.f32 %v91, %v95
  %v100 = vadd.f32 %v92, %v96
  %v101 = vadd.f32 %v93, %v97
  %v102 = vmul.f32 %v86, 0.49268782
  %v103 = vmul.f32 %v87, 0.49268782
  %v104 = vmul.f32 %v88, 0.49268782
  %v105 = vmul.f32 %v89, 0.49268782
  %v106 = vadd.f32 %v98, %v102
  %v107 = vadd.f32 %v99, %v103
  %v108 = vadd.f32 %v100, %v104
  %v109 = vadd.f32 %v101, %v105
  %v110 = vpack.c.bf16 %v107, %v106
  %v111 = vpack.c.bf16 %v109, %v108
  %v113 = vshrl.u32 %v110, 16
  %v115 = vrot.slane %v113, 7
  %v116 = vshll.u32 %v110, 16
  %v118 = vor.u32 %v115, %v116
  %v122 = vshrl.u32 %v111, 16
  %v124 = vrot.slane %v122, 6
  %v125 = vshll.u32 %v111, 16
  %v127 = vrot.slane %v125, 7
  %v128 = vor.u32 %v124, %v127
  %vm130 = vcmask 1040384
  %vm131 = vsmask.f32 256
  %vm132 = vmand %vm130, %vm131
  %v133 = vsel %vm132, 0, %v118
  %v134 = vsel %vm132, %v115, 0
  %vm135 = vcmask 1040384
  %v138 = vsel %vm135, %v134, 0
  %vm140 = vcmask 1041408
  %vm141 = vsmask.f32 1280
  %vm142 = vmand %vm140, %vm141
  %v143 = vsel %vm142, %v138, %v128
  %v144 = vsel %vm142, %v128, 0
  %v177 = vunpack.c.l.b16 %v21
  %v178 = vunpack.c.h.b16 %v21
  %v179 = vunpack.c.l.b16 %v22
  %v180 = vunpack.c.l.b16 %v23
  %v181 = vunpack.c.h.b16 %v23
  %v182 = vunpack.c.l.b16 %v24
  %v183 = vunpack.c.l.b16 %v25
  %v184 = vunpack.c.h.b16 %v25
  %v185 = vunpack.c.l.b16 %v26
  %v186 = vunpack.c.l.b16 %v27
  %v187 = vunpack.c.h.b16 %v27
  %v188 = vunpack.c.l.b16 %v28
  %v189 = vunpack.c.l.b16 %v29
  %v190 = vunpack.c.h.b16 %v29
  %v191 = vunpack.c.l.b16 %v30
  %v192 = vunpack.c.l.b16 %v31
  %v193 = vunpack.c.h.b16 %v31
  %v194 = vunpack.c.l.b16 %v32
  %v195 = vunpack.c.l.b16 %v33
  %v196 = vunpack.c.h.b16 %v33
  %v197 = vunpack.c.l.b16 %v34
  %v198 = vunpack.c.l.b16 %v35
  %v199 = vunpack.c.h.b16 %v35
  %v200 = vunpack.c.l.b16 %v36
  %v201 = vunpack.c.l.b16 %v37
  %v202 = vunpack.c.h.b16 %v37
  %v203 = vunpack.c.l.b16 %v38
  %v204 = vunpack.c.l.b16 %v39
  %v205 = vunpack.c.h.b16 %v39
  %v206 = vunpack.c.l.b16 %v40
  %v207 = vunpack.c.l.b16 %v41
  %v208 = vunpack.c.h.b16 %v41
  %v209 = vunpack.c.l.b16 %v42
  %v210 = vunpack.c.l.b16 %v43
  %v211 = vunpack.c.h.b16 %v43
  %v212 = vunpack.c.l.b16 %v44
  %v213 = vunpack.c.l.b16 %v45
  %v214 = vunpack.c.h.b16 %v45
  %v215 = vunpack.c.l.b16 %v46
  %v216 = vunpack.c.l.b16 %v47
  %v217 = vunpack.c.h.b16 %v47
  %v218 = vunpack.c.l.b16 %v48
  %v219 = vunpack.c.l.b16 %v49
  %v220 = vunpack.c.h.b16 %v49
  %v221 = vunpack.c.l.b16 %v50
  %v222 = vunpack.c.l.b16 %v51
  %v223 = vunpack.c.h.b16 %v51
  %v224 = vunpack.c.l.b16 %v52
  %v225 = vpack.c.b16 %v180, %v177
  %v226 = vpack.c.b16 %v181, %v178
  %v227 = vpack.c.b16 %v182, %v179
  %v228 = vpack.c.b16 %v186, %v183
  %v229 = vpack.c.b16 %v187, %v184
  %v230 = vpack.c.b16 %v188, %v185
  %v231 = vpack.c.b16 %v192, %v189
  %v232 = vpack.c.b16 %v193, %v190
  %v233 = vpack.c.b16 %v194, %v191
  %v234 = vpack.c.b16 %v198, %v195
  %v235 = vpack.c.b16 %v199, %v196
  %v236 = vpack.c.b16 %v200, %v197
  %v237 = vpack.c.b16 %v204, %v201
  %v238 = vpack.c.b16 %v205, %v202
  %v239 = vpack.c.b16 %v206, %v203
  %v240 = vpack.c.b16 %v210, %v207
  %v241 = vpack.c.b16 %v211, %v208
  %v242 = vpack.c.b16 %v212, %v209
  %v243 = vpack.c.b16 %v216, %v213
  %v244 = vpack.c.b16 %v217, %v214
  %v245 = vpack.c.b16 %v218, %v215
  %v246 = vpack.c.b16 %v222, %v219
  %v247 = vpack.c.b16 %v223, %v220
  %v248 = vpack.c.b16 %v224, %v221
  %273 = vmatprep.subr.bf16.mxu0 %v226
  %274 = vmatpush1.bf16.msra.mxu0 %v225
  %275 = vmatprep.subr.bf16.mxu0 %v229
  %276 = vmatpush1.bf16.msra.mxu0 %v228
  %277 = vmatprep.subr.bf16.mxu0 %v232
  %278 = vmatpush1.bf16.msra.mxu0 %v231
  %279 = vmatprep.subr.bf16.mxu0 %v235
  %280 = vmatpush1.bf16.msra.mxu0 %v234
  %281 = vmatprep.subr.bf16.mxu0 %v238
  %282 = vmatpush1.bf16.msra.mxu0 %v237
  %283 = vmatprep.subr.bf16.mxu0 %v241
  %284 = vmatpush1.bf16.msra.mxu0 %v240
  %285 = vmatprep.subr.bf16.mxu0 %v244
  %286 = vmatpush1.bf16.msra.mxu0 %v243
  %287 = vmatprep.subr.bf16.mxu0 %v247
  %288 = vmatpush1.bf16.msra.mxu0 %v246
  %289 = vmatprep.subr.bf16.mxu0 0
  %290 = vmatpush1.bf16.msra.mxu0 0
  %291 = vmatprep.subr.bf16.mxu0 0
  %292 = vmatpush1.bf16.msra.mxu0 0
  %293 = vmatprep.subr.bf16.mxu0 0
  %294 = vmatpush1.bf16.msra.mxu0 0
  %295 = vmatprep.subr.bf16.mxu0 0
  %296 = vmatpush1.bf16.msra.mxu0 0
  %297 = vmatprep.subr.bf16.mxu0 0
  %298 = vmatpush1.bf16.msra.mxu0 0
  %299 = vmatprep.subr.bf16.mxu0 0
  %300 = vmatpush1.bf16.msra.mxu0 0
  %301 = vmatprep.subr.bf16.mxu0 0
  %302 = vmatpush1.bf16.msra.mxu0 0
  %303 = vmatprep.subr.bf16.mxu0 0
  %304 = vmatpush1.bf16.msra.mxu0 0
  %305 = vmatprep.mubr.bf16.mxu0 0
  %306 = vmatmul.mubr.bf16.gmra.mrb[0].mxu0 %v133
  %v307 = vpop.f32.mrb[0].mxu0
  %v308 = vadd.f32 0.0, %v307
  %v309 = vpop.f32.mrb[0].mxu0
  %v310 = vadd.f32 0.0, %v309
  %v311 = vpop.f32.mrb[0].mxu0
  %v312 = vadd.f32 0.0, %v311
  %v313 = vpop.f32.mrb[0].mxu0
  %v314 = vadd.f32 0.0, %v313
  %315 = vmatprep.mubr.bf16.mxu0 0
  %316 = vmatmul.mubr.bf16.gmra.mrb[0].mxu0 %v143
  %v317 = vpop.f32.mrb[0].mxu0
  %v318 = vadd.f32 0.0, %v317
  %v319 = vpop.f32.mrb[0].mxu0
  %v320 = vadd.f32 0.0, %v319
  %v321 = vpop.f32.mrb[0].mxu0
  %v322 = vadd.f32 0.0, %v321
  %v323 = vpop.f32.mrb[0].mxu0
  %v324 = vadd.f32 0.0, %v323
  %325 = vmatprep.mubr.bf16.mxu0 0
  %326 = vmatmul.mubr.bf16.gmra.mrb[0].mxu0 %v144
  %v327 = vpop.f32.mrb[0].mxu0
  %v328 = vadd.f32 0.0, %v327
  %v329 = vpop.f32.mrb[0].mxu0
  %v330 = vadd.f32 0.0, %v329
  %v331 = vpop.f32.mrb[0].mxu0
  %v332 = vpop.f32.mrb[0].mxu0
  %333 = vdwg.mxu0
  %334 = vmatprep.subr.bf16.mxu0 0
  %335 = vmatpush1.bf16.msra.mxu0 %v227
  %336 = vmatprep.subr.bf16.mxu0 0
  %337 = vmatpush1.bf16.msra.mxu0 %v230
  %338 = vmatprep.subr.bf16.mxu0 0
  %339 = vmatpush1.bf16.msra.mxu0 %v233
  %340 = vmatprep.subr.bf16.mxu0 0
  %341 = vmatpush1.bf16.msra.mxu0 %v236
  %342 = vmatprep.subr.bf16.mxu0 0
  %343 = vmatpush1.bf16.msra.mxu0 %v239
  %344 = vmatprep.subr.bf16.mxu0 0
  %345 = vmatpush1.bf16.msra.mxu0 %v242
  %346 = vmatprep.subr.bf16.mxu0 0
  %347 = vmatpush1.bf16.msra.mxu0 %v245
  %348 = vmatprep.subr.bf16.mxu0 0
  %349 = vmatpush1.bf16.msra.mxu0 %v248
  %350 = vmatprep.subr.bf16.mxu0 0
  %351 = vmatpush1.bf16.msra.mxu0 0
  %352 = vmatprep.subr.bf16.mxu0 0
  %353 = vmatpush1.bf16.msra.mxu0 0
  %354 = vmatprep.subr.bf16.mxu0 0
  %355 = vmatpush1.bf16.msra.mxu0 0
  %356 = vmatprep.subr.bf16.mxu0 0
  %357 = vmatpush1.bf16.msra.mxu0 0
  %358 = vmatprep.subr.bf16.mxu0 0
  %359 = vmatpush1.bf16.msra.mxu0 0
  %360 = vmatprep.subr.bf16.mxu0 0
  %361 = vmatpush1.bf16.msra.mxu0 0
  %362 = vmatprep.subr.bf16.mxu0 0
  %363 = vmatpush1.bf16.msra.mxu0 0
  %364 = vmatprep.subr.bf16.mxu0 0
  %365 = vmatpush1.bf16.msra.mxu0 0
  %366 = vmatprep.mubr.bf16.mxu0 0
  %367 = vmatmul.mubr.bf16.gmra.mrb[0].mxu0 %v133
  %v368 = vpop.f32.mrb[0].mxu0
  %v369 = vadd.f32 0.0, %v368
  %v370 = vpop.f32.mrb[0].mxu0
  %v371 = vpop.f32.mrb[0].mxu0
  %v372 = vadd.f32 0.0, %v371
  %v373 = vpop.f32.mrb[0].mxu0
  %374 = vmatprep.mubr.bf16.mxu0 0
  %375 = vmatmul.mubr.bf16.gmra.mrb[0].mxu0 %v143
  %v376 = vpop.f32.mrb[0].mxu0
  %v377 = vadd.f32 0.0, %v376
  %v378 = vpop.f32.mrb[0].mxu0
  %v379 = vpop.f32.mrb[0].mxu0
  %v380 = vadd.f32 0.0, %v379
  %v381 = vpop.f32.mrb[0].mxu0
  %382 = vmatprep.mubr.bf16.mxu0 0
  %383 = vmatmul.mubr.bf16.gmra.mrb[0].mxu0 %v144
  %v384 = vpop.f32.mrb[0].mxu0
  %v385 = vadd.f32 0.0, %v384
  %v386 = vpop.f32.mrb[0].mxu0
  %v387 = vpop.f32.mrb[0].mxu0
  %v388 = vpop.f32.mrb[0].mxu0
  %389 = vdwg.mxu0
  %vm393 = vcmask 1046528
  %v394 = vrot.slane %v310, 1
  %v395 = vrot.slane %v314, 1
  %v396 = vsel %vm393, %v394, %v395
  %v397 = vrot.slane %v320, 1
  %v398 = vsel %vm393, %v395, %v397
  %v401 = vadd.f32 %v308, %v396
  %v402 = vadd.f32 %v312, %v398
  %vm406 = vcmask 1045504
  %v407 = vrot.slane %v369, 2
  %v408 = vrot.slane %v372, 2
  %v409 = vsel %vm406, %v407, %v408
  %v410 = vrot.slane %v377, 2
  %v411 = vsel %vm406, %v408, %v410
  %v414 = vadd.f32 %v401, %v409
  %v415 = vadd.f32 %v402, %v411
  %v417 = vlaneseq
  %v418 = vshrl.u32 %v417, 7
  %v419 = vsub.s32 0, %v418
  %v420 = vrot.slane %v53, %v419
  %v422 = vadd.f32 %v414, %v420
  %v423 = vadd.f32 %v415, %v420
  %v424 = vmax.f32 %v422, 0.0
  %v425 = vmax.f32 %v423, 0.0
  %426 = vst [vmem:[%s5] sm:$0xff] %v424
  %427 = vst [vmem:[%s5 + $0x8] sm:$0xff] %v425
  %v430 = vrot.slane %v324, 1
  %v431 = vsel %vm393, %v397, %v430
  %v432 = vrot.slane %v330, 1
  %v433 = vsel %vm393, %v430, %v432
  %v437 = vadd.f32 %v318, %v431
  %v438 = vadd.f32 %v322, %v433
  %v439 = vadd.f32 %v328, %v432
  %v442 = vrot.slane %v380, 2
  %v443 = vsel %vm406, %v410, %v442
  %v444 = vrot.slane %v385, 2
  %v445 = vsel %vm406, %v442, %v444
  %v449 = vadd.f32 %v437, %v443
  %v450 = vadd.f32 %v438, %v445
  %v451 = vadd.f32 %v439, %v444
  %v452 = vadd.f32 %v449, %v420
  %v453 = vadd.f32 %v450, %v420
  %v454 = vadd.f32 %v451, %v420
  %v455 = vmax.f32 %v452, 0.0
  %v456 = vmax.f32 %v453, 0.0
  %v457 = vmax.f32 %v454, 0.0
  %s458 = scalar_lea.vmem %s5, 16
  %459 = vst [vmem:[%s458 - $0x2] sm:$0xfc] %v455
  %460 = vst [vmem:[%s458 + $0x6] sm:$0xff] %v456
  %461 = vst [vmem:[%s458 + $0xe] sm:$0x3] %v457
  // Predicated region
  $region22: #{forward.1} parent=0 // pred_check
    _
  $region23: #{forward.1} parent=0 // pred_check_branch
    %463 = sbr.rel (0) target = $region25
  $region24: #{forward.1} parent=0 // pred_region
    _
  $region25: #{forward.1} parent=0 // pred_fallthru
    _
  // Predicated region
  $region26: #{forward.1} parent=0 // pred_check
    _
  $region27: #{forward.1} parent=0 // pred_check_branch
    %465 = sbr.rel (0) target = $region29
  $region28: #{forward.1} parent=0 // pred_region
    _
  $region29: #{forward.1} parent=0 // pred_fallthru
    _

</llo_original>
